<compile_context>
chip_gen: v6e
topology: v6e:2x2x1
jax: 0.10.0
libtpu: 0.0.40
codegen_flags: <defaults>
</compile_context>

<pallas_src>
import functools

import numpy as np
import jax
import jax.numpy as jnp
from jax.experimental import pallas as pl
from jax.experimental.pallas import tpu as pltpu


def _round_up(a, b):
    return ((a + b - 1) // b) * b


def _cdiv(a, b):
    return (a + b - 1) // b


def _patch_embed_kernel(w_ref, prm_ref, p_ref, o_ref):
    # w_ref:   (D, K)  bf16  conv weight (time channel folded out), grid-invariant
    # prm_ref: (D, 3)  f32   packed [b_eff | ln_gamma | ln_beta], grid-invariant
    # p_ref:   (K, TM) bf16  im2col patches tile (token axis M in lanes)
    # o_ref:   (TM, D) f32   LayerNorm'ed embeddings, already (token, feature)
    y = jnp.dot(w_ref[...], p_ref[...], preferred_element_type=jnp.float32)  # (D, TM) f32
    b = prm_ref[:, 0:1]        # (D, 1)  effective bias (timestep folded in)
    g = prm_ref[:, 1:2]        # (D, 1)  LayerNorm gamma
    beta = prm_ref[:, 2:3]     # (D, 1)  LayerNorm beta
    y = y + b
    # LayerNorm over features (sublane axis D), eps = 1e-5 (PyTorch default).
    # One-pass moments: the two cross-sublane XLU reductions are independent.
    mean = jnp.mean(y, axis=0, keepdims=True)                     # (1, TM)
    mean_sq = jnp.mean(y * y, axis=0, keepdims=True)              # (1, TM)
    var = mean_sq - mean * mean
    y_hat = (y - mean) * jax.lax.rsqrt(var + 1e-5)
    out = y_hat * g + beta                                        # (D, TM)
    # Emit (TM, D) directly: the XLU transpose rides an otherwise idle slot in
    # this DMA-bound kernel and removes the wrapper-side XLA transpose pass.
    o_ref[...] = out.T


def _im2col_T(x, patch_size, stride):
    """x: (B, C, H, W) -> (K, M) with K = C*p*p, M = B*H_out*W_out.

    K ordering is (c, ph, pw) (matches conv_w[:, :C].reshape(D, K)); M ordering
    is (b, h_out, w_out) row-major (matches x.flatten(2).transpose(1, 2))."""
    B, C, H, W = x.shape
    p, s = patch_size, stride
    H_out = (H - p) // s + 1
    W_out = (W - p) // s + 1
    K = C * p * p
    M = B * H_out * W_out
    if s == p and H % p == 0 and W % p == 0:
        # Non-overlapping patches: pure reshape/transpose, no gather.
        patches = x.reshape(B, C, H_out, p, W_out, p)
    else:
        rows = (jnp.arange(H_out) * s)[:, None] + jnp.arange(p)[None, :]   # (H_out, p)
        cols = (jnp.arange(W_out) * s)[:, None] + jnp.arange(p)[None, :]   # (W_out, p)
        patches = x[:, :, rows[:, :, None, None], cols[None, None, :, :]]
        # -> (B, C, H_out, p, W_out, p)
    patches_T = patches.transpose(1, 3, 5, 0, 2, 4).reshape(K, M)          # (K, M)
    return patches_T, H_out, W_out


@functools.partial(jax.jit, static_argnames=("patch_size", "stride", "compute_dtype"))
def patch_embedding_forward(x, timestep, params, patch_size, stride,
                            compute_dtype=jnp.bfloat16):
    """x: (B, C, H, W) f32; timestep: scalar.
    params: conv_w (D, C+1, p, p), conv_b (D,), ln_g (D,), ln_b (D,).
    Returns (B, L, D) matching the PyTorch module."""
    B, C, H, W = x.shape
    D = params["conv_w"].shape[0]

    # --- Fold the constant timestep channel into the bias (exact). ----------
    # Conv over a constant channel == timestep * sum(window weights):
    #   b_eff = conv_b + timestep * conv_w[:, C].sum(axis=(1, 2))
    # timestep / time-channel weights are rounded through compute_dtype so the
    # fold matches a conv whose operands were cast to compute_dtype.
    t_c = jnp.asarray(timestep, dtype=x.dtype).astype(compute_dtype).astype(jnp.float32)
    w_time = params["conv_w"][:, C].astype(compute_dtype).astype(jnp.float32)  # (D, p, p)
    b_eff = params["conv_b"].astype(jnp.float32) + t_c * jnp.sum(w_time, axis=(1, 2))

    # im2col of x only (no time channel); TRANSPOSED as (K, M) so the token
    # axis M sits in lanes inside the kernel (lane-dense loads/compute).
    patches_T, H_out, W_out = _im2col_T(x, patch_size, stride)                 # (K, M)
    K, M = patches_T.shape
    L = H_out * W_out

    # --- Tile the token axis M (lanes). -------------------------------------
    # Large TM amortizes the ~0.35 us/step grid overhead; working set at
    # TM=8192 is only ~4 MiB double-buffered.  Prefer an even step count so
    # the single "parallel" axis load-balances v7x's two TensorCores.
    TM_TARGET = 8192
    M128 = _round_up(M, 128)
    if M128 <= TM_TARGET:
        TM = M128
    else:
        n = _cdiv(M128, TM_TARGET)
        if n % 2:
            n += 1
        TM = _round_up(_cdiv(M128, n), 128)
    M_pad = _round_up(M, TM)
    n_steps = M_pad // TM
    if M_pad > M:
        patches_T = jnp.pad(patches_T, ((0, 0), (0, M_pad - M)))

    # bf16 operands for the MXU; accumulation + LayerNorm math stay f32.
    patches_c = patches_T.astype(compute_dtype)
    w_c = params["conv_w"][:, :C].reshape(D, K).astype(compute_dtype)          # (D, K)
    prm = jnp.stack([b_eff,
                     params["ln_g"].astype(jnp.float32),
                     params["ln_b"].astype(jnp.float32)], axis=1)              # (D, 3)

    # Deeper pipelining when the grid is short (prologue DMA otherwise exposed).
    if 2 <= n_steps <= 4:
        patches_spec = pl.BlockSpec((K, TM), lambda i: (0, i),
                                    pipeline_mode=pl.Buffered(3))
    else:
        patches_spec = pl.BlockSpec((K, TM), lambda i: (0, i))

    out_md = pl.pallas_call(
        _patch_embed_kernel,
        out_shape=jax.ShapeDtypeStruct((M_pad, D), jnp.float32),
        grid=(n_steps,),
        in_specs=[
            pl.BlockSpec((D, K), lambda i: (0, 0)),      # weight: grid-invariant
            pl.BlockSpec((D, 3), lambda i: (0, 0)),      # packed b_eff/gamma/beta
            patches_spec,                                 # patches tile
        ],
        out_specs=pl.BlockSpec((TM, D), lambda i: (i, 0)),
        compiler_params=pltpu.CompilerParams(
            dimension_semantics=("parallel",),            # megacore sharding on v7x
            vmem_limit_bytes=32 * 1024 * 1024,            # fits v7x 64 MiB physical
        ),
    )(w_c, prm, patches_c)

    # Kernel already emits (token, feature); wrapper is just slice + reshape.
    return out_md[:M].reshape(B, L, D)


def _reference_forward(x, timestep, params, patch_size, stride,
                       compute_dtype=jnp.bfloat16):
    """Pure-JAX reference (lax.conv, concat time channel) with the same bf16
    operand rounding as the kernel path."""
    B, C, H, W = x.shape
    time_channel = jnp.full((B, 1, H, W), timestep, dtype=x.dtype)
    x_cat = jnp.concatenate([x, time_channel], axis=1)
    xc = x_cat.astype(compute_dtype).astype(jnp.float32)
    wc = params["conv_w"].astype(compute_dtype).astype(jnp.float32)
    y = jax.lax.conv_general_dilated(
        xc, wc, window_strides=(stride, stride), padding="VALID",
        dimension_numbers=("NCHW", "OIHW", "NCHW"),
        preferred_element_type=jnp.float32)
    y = y + params["conv_b"][None, :, None, None]
    B_, D, Ho, Wo = y.shape
    y = y.reshape(B_, D, Ho * Wo).transpose(0, 2, 1)                        # (B, L, D)
    mean = jnp.mean(y, axis=-1, keepdims=True)
    var = jnp.mean((y - mean) ** 2, axis=-1, keepdims=True)
    return (y - mean) / jnp.sqrt(var + 1e-5) * params["ln_g"] + params["ln_b"]


if __name__ == "__main__":
    # Module config: dim=32, patch_size=4, stride=4, in_channels=4
    dim, patch_size, stride, in_channels = 32, 4, 4, 4
    B, H, W = 2, 16, 16
    timestep = 0.25

    key = jax.random.PRNGKey(0)
    k_x, k_w, k_b, k_g, k_beta = jax.random.split(key, 5)

    x = jax.random.normal(k_x, (B, in_channels, H, W), dtype=jnp.float32)

    C_tot = in_channels + 1
    params = {
        "conv_w": 0.1 * jax.random.normal(
            k_w, (dim, C_tot, patch_size, patch_size), dtype=jnp.float32),
        "conv_b": 0.1 * jax.random.normal(k_b, (dim,), dtype=jnp.float32),
        "ln_g": jnp.ones((dim,), dtype=jnp.float32)
                + 0.01 * jax.random.normal(k_g, (dim,), dtype=jnp.float32),
        "ln_b": 0.01 * jax.random.normal(k_beta, (dim,), dtype=jnp.float32),
    }

    out = patch_embedding_forward(x, timestep, params, patch_size, stride)
    out = jax.block_until_ready(out)

    ref = jax.block_until_ready(
        _reference_forward(x, timestep, params, patch_size, stride))
    np.testing.assert_allclose(np.asarray(out), np.asarray(ref),
                               atol=2e-3, rtol=2e-3)

    H_out = (H - patch_size) // stride + 1
    W_out = (W - patch_size) // stride + 1
    assert out.shape == (B, H_out * W_out, dim)
    print("KERNEL_OK")
</pallas_src>

<mosaic_0001>
module attributes {stable_mosaic.version = 11 : i64} {
  func.func @_patch_embed_kernel(%arg0: i32, %arg1: memref<32x64xbf16, #tpu.memory_space<vmem>>, %arg2: memref<32x3xf32, #tpu.memory_space<vmem>>, %arg3: memref<64x128xbf16, #tpu.memory_space<vmem>>, %arg4: memref<128x32xf32, #tpu.memory_space<vmem>>) attributes {dimension_semantics = [#tpu.dimension_semantics<parallel>], iteration_bounds = array<i64: 1>, scalar_prefetch = 0 : i64, scratch_operands = 0 : i64, tpu.core_type = #tpu.core_type<tc>, window_params = [{pipeline_mode = #tpu.pipeline_mode<synchronous>, transform_indices = @transform_0, window_bounds = array<i64: 32, 64>}, {pipeline_mode = #tpu.pipeline_mode<synchronous>, transform_indices = @transform_1, window_bounds = array<i64: 32, 3>}, {transform_indices = @transform_2, window_bounds = array<i64: 64, 128>}, {transform_indices = @transform_3, window_bounds = array<i64: 128, 32>}]} {
    %c0 = arith.constant 0 : index
    %c0_0 = arith.constant 0 : index
    %0 = vector.load %arg1[%c0, %c0_0] : memref<32x64xbf16, #tpu.memory_space<vmem>>, vector<32x64xbf16>
    %c0_1 = arith.constant 0 : index
    %c0_2 = arith.constant 0 : index
    %1 = vector.load %arg3[%c0_1, %c0_2] : memref<64x128xbf16, #tpu.memory_space<vmem>>, vector<64x128xbf16>
    %cst = arith.constant dense<0.000000e+00> : vector<32x128xf32>
    %2 = tpu.matmul %0, %1, %cst {dimension_numbers = #tpu.dot_dimension_numbers<[1], [0], [0], [1], [0, 0, 1, 1], [], []>} : vector<32x64xbf16>, vector<64x128xbf16>, vector<32x128xf32> -> vector<32x128xf32>
    %c0_3 = arith.constant 0 : index
    %c0_4 = arith.constant 0 : index
    %3 = vector.load %arg2[%c0_3, %c0_4] : memref<32x3xf32, #tpu.memory_space<vmem>>, vector<32x1xf32>
    %c0_5 = arith.constant 0 : index
    %c1 = arith.constant 1 : index
    %4 = vector.load %arg2[%c0_5, %c1] : memref<32x3xf32, #tpu.memory_space<vmem>>, vector<32x1xf32>
    %c0_6 = arith.constant 0 : index
    %c2 = arith.constant 2 : index
    %5 = vector.load %arg2[%c0_6, %c2] : memref<32x3xf32, #tpu.memory_space<vmem>>, vector<32x1xf32>
    %6 = vector.broadcast %3 : vector<32x1xf32> to vector<32x128xf32>
    %7 = arith.addf %2, %6 : vector<32x128xf32>
    %cst_7 = arith.constant dense<0.000000e+00> : vector<128xf32>
    %8 = vector.multi_reduction <add>, %7, %cst_7 [0] : vector<32x128xf32> to vector<128xf32>
    %9 = vector.shape_cast %8 : vector<128xf32> to vector<1x128xf32>
    %cst_8 = arith.constant 3.200000e+01 : f32
    %10 = vector.broadcast %cst_8 : f32 to vector<1x128xf32>
    %11 = arith.divf %9, %10 : vector<1x128xf32>
    %12 = arith.mulf %7, %7 : vector<32x128xf32>
    %cst_9 = arith.constant dense<0.000000e+00> : vector<128xf32>
    %13 = vector.multi_reduction <add>, %12, %cst_9 [0] : vector<32x128xf32> to vector<128xf32>
    %14 = vector.shape_cast %13 : vector<128xf32> to vector<1x128xf32>
    %cst_10 = arith.constant 3.200000e+01 : f32
    %15 = vector.broadcast %cst_10 : f32 to vector<1x128xf32>
    %16 = arith.divf %14, %15 : vector<1x128xf32>
    %17 = arith.mulf %11, %11 : vector<1x128xf32>
    %18 = arith.subf %16, %17 : vector<1x128xf32>
    %19 = vector.broadcast %11 : vector<1x128xf32> to vector<32x128xf32>
    %20 = arith.subf %7, %19 : vector<32x128xf32>
    %cst_11 = arith.constant 9.99999974E-6 : f32
    %21 = vector.broadcast %cst_11 : f32 to vector<1x128xf32>
    %22 = arith.addf %18, %21 : vector<1x128xf32>
    %23 = math.rsqrt %22 : vector<1x128xf32>
    %24 = vector.broadcast %23 : vector<1x128xf32> to vector<32x128xf32>
    %25 = arith.mulf %20, %24 : vector<32x128xf32>
    %26 = vector.broadcast %4 : vector<32x1xf32> to vector<32x128xf32>
    %27 = arith.mulf %25, %26 : vector<32x128xf32>
    %28 = vector.broadcast %5 : vector<32x1xf32> to vector<32x128xf32>
    %29 = arith.addf %27, %28 : vector<32x128xf32>
    %30 = tpu.transpose %29, [1, 0] : vector<32x128xf32> -> vector<128x32xf32>
    %c0_12 = arith.constant 0 : index
    %c0_13 = arith.constant 0 : index
    %31 = vector.load %arg4[%c0_12, %c0_13] : memref<128x32xf32, #tpu.memory_space<vmem>>, vector<128x32xf32>
    tpu.vector_store %arg4[%c0_12, %c0_13], %30 {strides = array<i32>} : memref<128x32xf32, #tpu.memory_space<vmem>>, vector<128x32xf32>,
    return
  }
  func.func @transform_0(%arg0: i32) -> (i32, i32) {
    %c0_i32 = arith.constant 0 : i32
    %c0_i32_0 = arith.constant 0 : i32
    %c0_i32_1 = arith.constant 0 : i32
    return %c0_i32, %c0_i32_0 : i32, i32
  }
  func.func @transform_1(%arg0: i32) -> (i32, i32) {
    %c0_i32 = arith.constant 0 : i32
    %c0_i32_0 = arith.constant 0 : i32
    %c0_i32_1 = arith.constant 0 : i32
    return %c0_i32, %c0_i32_0 : i32, i32
  }
  func.func @transform_2(%arg0: i32) -> (i32, i32) {
    %c0_i32 = arith.constant 0 : i32
    %c0_i32_0 = arith.constant 0 : i32
    return %c0_i32, %arg0 : i32, i32
  }
  func.func @transform_3(%arg0: i32) -> (i32, i32) {
    %c0_i32 = arith.constant 0 : i32
    %c0_i32_0 = arith.constant 0 : i32
    return %arg0, %c0_i32 : i32, i32
  }
}

</mosaic_0001>

<llo_original>
// kernel: patch_embedding_forward.1
$region0: #{patch_embedding_forward.1}
  #allocation0 [shape = 'u32[]', space=smem, size = 0x4, offset = 0x4, fixed_abs, tag = 'smem constant byte address 0x4 - core index']
  #allocation1 [shape = 'u32[144,128]{1,0:T(1,128)}', space=vmem, size = 0x12000, scoped, tag = 'internal scratch']
  %s0 = inlined_call_operand.vmem [shape: bf16[32,64], index: 0, kind: input, shape index: {}]
  %s1 = inlined_call_operand.vmem [shape: f32[32,3], index: 1, kind: input, shape index: {}]
  %s2 = inlined_call_operand.vmem [shape: bf16[64,128], index: 2, kind: input, shape index: {}]
  %s3 = inlined_call_operand.vmem [shape: f32[128,32], index: 3, kind: output, shape index: {}]
  %s4 = sld [smem:[#allocation0]]
  $region22: #{patch_embedding_forward.1} parent=0
    _
  %s6 = ssub.s32 1, %s4
  %s7 = scalar_select 0, %s6, %s4
  // Predicated region
  $region2: #{patch_embedding_forward.1} parent=0 // pred_check
    _
  $region3: #{patch_embedding_forward.1} parent=0 // pred_check_branch
    %9 = sbr.rel (0) target = $region5
  $region4: #{patch_embedding_forward.1} parent=0 // pred_region
    _
  $region5: #{patch_embedding_forward.1} parent=0 // pred_fallthru
    _
  // Predicated region
  $region6: #{patch_embedding_forward.1} parent=0 // pred_check
    _
  $region7: #{patch_embedding_forward.1} parent=0 // pred_check_branch
    %11 = sbr.rel (0) target = $region9
  $region8: #{patch_embedding_forward.1} parent=0 // pred_region
    _
  $region9: #{patch_embedding_forward.1} parent=0 // pred_fallthru
    _
  // Predicated region
  $region10: #{patch_embedding_forward.1} parent=0 // pred_check
    _
  $region11: #{patch_embedding_forward.1} parent=0 // pred_check_branch
    %13 = sbr.rel (0) target = $region13
  $region12: #{patch_embedding_forward.1} parent=0 // pred_region
    _
  $region13: #{patch_embedding_forward.1} parent=0 // pred_fallthru
    _
  %v15 = vld [vmem:[%s0] sm:$0xf]
  %v16 = vld [vmem:[%s0 + $0x4] sm:$0xf]
  %v17 = vld [vmem:[%s0 + $0x8] sm:$0xf]
  %v18 = vld [vmem:[%s0 + $0xc] sm:$0xf]
  %v19 = vld [vmem:[%s2] sm:$0xf]
  %v20 = vld [vmem:[%s2 + $0x4] sm:$0xf]
  %v21 = vld [vmem:[%s2 + $0x8] sm:$0xf]
  %v22 = vld [vmem:[%s2 + $0xc] sm:$0xf]
  %v23 = vld [vmem:[%s2 + $0x10] sm:$0xf]
  %v24 = vld [vmem:[%s2 + $0x14] sm:$0xf]
  %v25 = vld [vmem:[%s2 + $0x18] sm:$0xf]
  %v26 = vld [vmem:[%s2 + $0x1c] sm:$0xf]
  %v27 = vld [vmem:[%s1] sm:$0xff]
  %v28 = vld [vmem:[%s1 + $0x8] sm:$0xff]
  %v29 = vld [vmem:[%s1 + $0x10] sm:$0xff]
  %v30 = vld [vmem:[%s1 + $0x18] sm:$0xff]
  %32 = vset.pattern.permute.xlu0 0
  %33 = vperm.xlu0 %32, %v27
  %v34 = vpop.permute.xlu0 %33
  %37 = vset.pattern.permute.xlu0 0
  %38 = vperm.xlu0 %37, %v28
  %v39 = vpop.permute.xlu0 %38
  %42 = vset.pattern.permute.xlu0 0
  %43 = vperm.xlu0 %42, %v29
  %v44 = vpop.permute.xlu0 %43
  %47 = vset.pattern.permute.xlu0 0
  %48 = vperm.xlu0 %47, %v30
  %v49 = vpop.permute.xlu0 %48
  %v55 = vunpack.c.l.b16 %v15
  %v56 = vunpack.c.l.b16 %v16
  %v57 = vunpack.c.l.b16 %v17
  %v58 = vunpack.c.l.b16 %v18
  %v59 = vpack.c.b16 %v56, %v55
  %v60 = vpack.c.b16 %v58, %v57
  %v69 = vunpack.c.l.b16 %v19
  %v70 = vunpack.c.l.b16 %v20
  %v71 = vunpack.c.l.b16 %v21
  %v72 = vunpack.c.l.b16 %v22
  %v73 = vunpack.c.l.b16 %v23
  %v74 = vunpack.c.l.b16 %v24
  %v75 = vunpack.c.l.b16 %v25
  %v76 = vunpack.c.l.b16 %v26
  %v77 = vpack.c.b16 %v70, %v69
  %v78 = vpack.c.b16 %v72, %v71
  %v79 = vpack.c.b16 %v74, %v73
  %v80 = vpack.c.b16 %v76, %v75
  %vm85 = vcmask 523264
  %v87 = vsel %vm85, %v59, 0
  %v90 = vsel %vm85, %v60, 0
  %92 = vmatprep.subr.bf16.mxu0 0
  %93 = vmatpush1.bf16.msra.mxu0 0
  %94 = vmatprep.subr.bf16.mxu0 0
  %95 = vmatpush1.bf16.msra.mxu0 0
  %96 = vmatprep.subr.bf16.mxu0 0
  %97 = vmatpush1.bf16.msra.mxu0 0
  %98 = vmatprep.subr.bf16.mxu0 0
  %99 = vmatpush1.bf16.msra.mxu0 0
  %100 = vmatprep.subr.bf16.mxu0 0
  %101 = vmatpush1.bf16.msra.mxu0 %v80
  %102 = vmatprep.subr.bf16.mxu0 0
  %103 = vmatpush1.bf16.msra.mxu0 %v79
  %104 = vmatprep.subr.bf16.mxu0 0
  %105 = vmatpush1.bf16.msra.mxu0 %v78
  %106 = vmatprep.subr.bf16.mxu0 0
  %107 = vmatpush1.bf16.msra.mxu0 %v77
  %108 = vmatprep.subr.bf16.mxu0 0
  %109 = vmatpush2.bf16.msra.mxu0 0
  %110 = vmatprep.subr.bf16.mxu0 0
  %111 = vmatpush2.bf16.msra.mxu0 0
  %112 = vmatprep.subr.bf16.mxu0 0
  %113 = vmatpush2.bf16.msra.mxu0 0
  %114 = vmatprep.subr.bf16.mxu0 0
  %115 = vmatpush2.bf16.msra.mxu0 0
  %116 = vmatprep.subr.bf16.mxu0 0
  %117 = vmatpush2.bf16.msra.mxu0 0
  %118 = vmatprep.subr.bf16.mxu0 0
  %119 = vmatpush2.bf16.msra.mxu0 0
  %120 = vmatprep.subr.bf16.mxu0 0
  %121 = vmatpush2.bf16.msra.mxu0 0
  %122 = vmatprep.subr.bf16.mxu0 0
  %123 = vmatpush2.bf16.msra.mxu0 0
  %124 = vmatprep.mubr.bf16.mxu0 0
  %125 = vmatmul.mubr.bf16.gmra.mxu0 %v87
  %v126 = vpop.f32.mrf.mxu0
  %v127 = vadd.f32 %v34, %v126
  %v128 = vpop.f32.mrf.mxu0
  %v129 = vpop.f32.mrf.mxu0
  %v130 = vadd.f32 %v39, %v129
  %v131 = vpop.f32.mrf.mxu0
  %132 = vmatprep.mubr.bf16.mxu0 0
  %133 = vmatmul.mubr.bf16.gmra.mxu0 %v90
  %v134 = vpop.f32.mrf.mxu0
  %v135 = vadd.f32 %v44, %v134
  %v136 = vpop.f32.mrf.mxu0
  %v137 = vpop.f32.mrf.mxu0
  %v138 = vadd.f32 %v49, %v137
  %v139 = vpop.f32.mrf.mxu0
  %140 = vdwg.mxu0
  %v141 = vadd.f32 %v127, %v130
  %v142 = vadd.f32 %v141, %v135
  %v143 = vadd.f32 %v142, %v138
  %v144 = vrot.slane %v143, 4
  %v145 = vadd.f32 %v143, %v144
  %v146 = vrot.slane %v145, 2
  %v147 = vadd.f32 %v145, %v146
  %v148 = vrot.slane %v147, 1
  %v149 = vadd.f32 %v147, %v148
  %v150 = vrcp.pop 32.0
  %v151 = vmul.f32 %v149, %v150
  %v152 = vmul.f32 %v127, %v127
  %v153 = vmul.f32 %v130, %v130
  %v154 = vmul.f32 %v135, %v135
  %v155 = vmul.f32 %v138, %v138
  %v156 = vadd.f32 %v152, %v153
  %v157 = vadd.f32 %v156, %v154
  %v158 = vadd.f32 %v157, %v155
  %v159 = vrot.slane %v158, 4
  %v160 = vadd.f32 %v158, %v159
  %v161 = vrot.slane %v160, 2
  %v162 = vadd.f32 %v160, %v161
  %v163 = vrot.slane %v162, 1
  %v164 = vadd.f32 %v162, %v163
  %v165 = vmul.f32 %v164, %v150
  %v166 = vmul.f32 %v151, %v151
  %v167 = vsub.f32 %v165, %v166
  %v168 = vsub.f32 %v127, %v151
  %v169 = vsub.f32 %v130, %v151
  %v170 = vsub.f32 %v135, %v151
  %v171 = vsub.f32 %v138, %v151
  %v172 = vadd.f32 %v167, 1e-05
  %v173 = vrsqrt.pop %v172
  %v174 = vmul.f32 %v168, %v173
  %v175 = vmul.f32 %v169, %v173
  %v176 = vmul.f32 %v170, %v173
  %v177 = vmul.f32 %v171, %v173
  %178 = vset.pattern.permute.xlu0 1
  %179 = vperm.xlu0 %178, %v27
  %v180 = vpop.permute.xlu0 %179
  %182 = vset.pattern.permute.xlu0 1
  %183 = vperm.xlu0 %182, %v28
  %v184 = vpop.permute.xlu0 %183
  %186 = vset.pattern.permute.xlu0 1
  %187 = vperm.xlu0 %186, %v29
  %v188 = vpop.permute.xlu0 %187
  %190 = vset.pattern.permute.xlu0 1
  %191 = vperm.xlu0 %190, %v30
  %v192 = vpop.permute.xlu0 %191
  %v194 = vmul.f32 %v174, %v180
  %v195 = vmul.f32 %v175, %v184
  %v196 = vmul.f32 %v176, %v188
  %v197 = vmul.f32 %v177, %v192
  %198 = vset.pattern.permute.xlu0 2
  %199 = vperm.xlu0 %198, %v27
  %v200 = vpop.permute.xlu0 %199
  %202 = vset.pattern.permute.xlu0 2
  %203 = vperm.xlu0 %202, %v28
  %v204 = vpop.permute.xlu0 %203
  %206 = vset.pattern.permute.xlu0 2
  %207 = vperm.xlu0 %206, %v29
  %v208 = vpop.permute.xlu0 %207
  %210 = vset.pattern.permute.xlu0 2
  %211 = vperm.xlu0 %210, %v30
  %v212 = vpop.permute.xlu0 %211
  %v214 = vadd.f32 %v194, %v200
  %v215 = vadd.f32 %v195, %v204
  %v216 = vadd.f32 %v196, %v208
  %v217 = vadd.f32 %v197, %v212
  %218 = vxpose.xlu0.b32.start [1/16] %v214, 128
  %219 = vxpose.xlu0.b32.cont [2/16] %v215, 128
  %220 = vxpose.xlu0.b32.cont [3/16] %v216, 128
  %221 = vxpose.xlu0.b32.cont [4/16] %v217, 128
  %222 = vxpose.xlu0.b32.cont [5/16] 0.0, 128
  %223 = vxpose.xlu0.b32.cont [6/16] 0.0, 128
  %224 = vxpose.xlu0.b32.cont [7/16] 0.0, 128
  %225 = vxpose.xlu0.b32.cont [8/16] 0.0, 128
  %226 = vxpose.xlu0.b32.cont [9/16] 0.0, 128
  %227 = vxpose.xlu0.b32.cont [10/16] 0.0, 128
  %228 = vxpose.xlu0.b32.cont [11/16] 0.0, 128
  %229 = vxpose.xlu0.b32.cont [12/16] 0.0, 128
  %230 = vxpose.xlu0.b32.cont [13/16] 0.0, 128
  %231 = vxpose.xlu0.b32.cont [14/16] 0.0, 128
  %232 = vxpose.xlu0.b32.cont [15/16] 0.0, 128
  %233 = vxpose.xlu0.b32.end [16/16] 0.0, 128
  %v234 = vpop.trf.xlu0
  %v235 = vpop.trf.xlu0
  %v236 = vpop.trf.xlu0
  %v237 = vpop.trf.xlu0
  %v238 = vpop.trf.xlu0
  %v239 = vpop.trf.xlu0
  %v240 = vpop.trf.xlu0
  %v241 = vpop.trf.xlu0
  %v242 = vpop.trf.xlu0
  %v243 = vpop.trf.xlu0
  %v244 = vpop.trf.xlu0
  %v245 = vpop.trf.xlu0
  %v246 = vpop.trf.xlu0
  %v247 = vpop.trf.xlu0
  %v248 = vpop.trf.xlu0
  %v249 = vpop.trf.xlu0
  %vm250 = vcmask 261120
  %251 = vst.msk [vmem:[%s3] sm:$0xff] %vm250, %v234
  %252 = vst.msk [vmem:[%s3 + $0x8] sm:$0xff] %vm250, %v235
  %253 = vst.msk [vmem:[%s3 + $0x10] sm:$0xff] %vm250, %v236
  %254 = vst.msk [vmem:[%s3 + $0x18] sm:$0xff] %vm250, %v237
  %255 = vst.msk [vmem:[%s3 + $0x20] sm:$0xff] %vm250, %v238
  %256 = vst.msk [vmem:[%s3 + $0x28] sm:$0xff] %vm250, %v239
  %257 = vst.msk [vmem:[%s3 + $0x30] sm:$0xff] %vm250, %v240
  %258 = vst.msk [vmem:[%s3 + $0x38] sm:$0xff] %vm250, %v241
  %259 = vst.msk [vmem:[%s3 + $0x40] sm:$0xff] %vm250, %v242
  %260 = vst.msk [vmem:[%s3 + $0x48] sm:$0xff] %vm250, %v243
  %261 = vst.msk [vmem:[%s3 + $0x50] sm:$0xff] %vm250, %v244
  %262 = vst.msk [vmem:[%s3 + $0x58] sm:$0xff] %vm250, %v245
  %263 = vst.msk [vmem:[%s3 + $0x60] sm:$0xff] %vm250, %v246
  %264 = vst.msk [vmem:[%s3 + $0x68] sm:$0xff] %vm250, %v247
  %265 = vst.msk [vmem:[%s3 + $0x70] sm:$0xff] %vm250, %v248
  %266 = vst.msk [vmem:[%s3 + $0x78] sm:$0xff] %vm250, %v249
  // Predicated region
  $region14: #{patch_embedding_forward.1} parent=0 // pred_check
    _
  $region15: #{patch_embedding_forward.1} parent=0 // pred_check_branch
    %268 = sbr.rel (0) target = $region17
  $region16: #{patch_embedding_forward.1} parent=0 // pred_region
    _
  $region17: #{patch_embedding_forward.1} parent=0 // pred_fallthru
    _
  // Predicated region
  $region18: #{patch_embedding_forward.1} parent=0 // pred_check
    _
  $region19: #{patch_embedding_forward.1} parent=0 // pred_check_branch
    %270 = sbr.rel (0) target = $region21
  $region20: #{patch_embedding_forward.1} parent=0 // pred_region
    _
  $region21: #{patch_embedding_forward.1} parent=0 // pred_fallthru
    _

</llo_original>
